<compile_context>
chip_gen: v7x
topology: tpu7x:2x2x1
jax: 0.10.0
libtpu: 0.0.40
codegen_flags: <defaults>
</compile_context>

<pallas_src>
import functools

import jax
import jax.numpy as jnp
from jax.experimental import pallas as pl
from jax.experimental.pallas import tpu as pltpu


def _avg_pool_kernel(x_ref, o_ref, acc_ref, *, inv_hw):
    # x_ref: (TB, TH, W, TC) input tile; o_ref: (TB, TC); acc_ref: f32 (TB, TC)
    h = pl.program_id(2)

    @pl.when(h == 0)
    def _():
        acc_ref[...] = jnp.zeros_like(acc_ref)

    # Sum the spatial tile straight into the f32 accumulator (no whole-tile f32
    # materialization, no per-element divide).
    acc_ref[...] += jnp.sum(x_ref[...], axis=(1, 2), dtype=jnp.float32)

    @pl.when(h == pl.num_programs(2) - 1)
    def _():
        # Single multiply by the static reciprocal on the tiny (TB, TC) result.
        o_ref[...] = (acc_ref[...] * inv_hw).astype(o_ref.dtype)


def _max_pool_kernel(x_ref, o_ref, acc_ref):
    h = pl.program_id(2)

    @pl.when(h == 0)
    def _():
        acc_ref[...] = jnp.full_like(acc_ref, -jnp.inf)

    # Reduce the tile in its native dtype, promote only the (TB, TC) partial max.
    tile_max = jnp.max(x_ref[...], axis=(1, 2)).astype(jnp.float32)
    acc_ref[...] = jnp.maximum(acc_ref[...], tile_max)

    @pl.when(h == pl.num_programs(2) - 1)
    def _():
        o_ref[...] = acc_ref[...].astype(o_ref.dtype)


def _pick_tiles(B, H, W, C, itemsize, target_bytes=4 << 20):
    """Pick (TB, TH, TC) so each input tile is <= ~target_bytes.

    Constraints respected:
      * output block (TB, TC): TB is a multiple of 8 or equals B; TC is a
        multiple of 128 or equals C (keeps stores unmasked when possible).
      * input block (TB, TH, W, TC): last two dims are (W, TC) with W always
        the full extent and TC as above, so DMAs stay contiguous/lane-dense.
    """
    # Batch tile.
    TB = 8 if (B > 8 and B % 8 == 0) else B

    # Channel tile: keep C whole unless a single (TB, 1, W, C) row slab already
    # blows the budget and C can be split into 128-aligned pieces.
    TC = C
    if C % 128 == 0:
        while (
            TC > 128
            and TB * W * TC * itemsize > target_bytes
            and (TC // 2) % 128 == 0
            and C % (TC // 2) == 0
        ):
            TC //= 2

    # H tile: largest divisor of H whose per-step tile stays under the budget.
    row_bytes = TB * W * TC * itemsize
    TH = 1
    for d in range(1, H + 1):
        if H % d == 0 and d * row_bytes <= target_bytes:
            TH = d
    return TB, TH, TC


def select_adaptive_pool2d(x, pool_type="avg", flatten=True):
    """Pallas equivalent of SelectAdaptivePool2d.forward (x is NHWC)."""
    B, H, W, C = x.shape
    itemsize = jnp.dtype(x.dtype).itemsize

    TB, TH, TC = _pick_tiles(B, H, W, C, itemsize)

    if pool_type == "avg":
        kernel = functools.partial(_avg_pool_kernel, inv_hw=1.0 / float(H * W))
    elif pool_type == "max":
        kernel = _max_pool_kernel
    else:
        raise ValueError("Unsupported pool_type: {}".format(pool_type))

    grid = (B // TB, C // TC, H // TH)

    out = pl.pallas_call(
        kernel,
        out_shape=jax.ShapeDtypeStruct((B, C), x.dtype),
        grid=grid,
        in_specs=[
            pl.BlockSpec((TB, TH, W, TC), lambda b, c, h: (b, h, 0, c)),
        ],
        out_specs=pl.BlockSpec((TB, TC), lambda b, c, h: (b, c)),
        scratch_shapes=[pltpu.VMEM((TB, TC), jnp.float32)],
        compiler_params=pltpu.CompilerParams(
            dimension_semantics=("parallel", "parallel", "arbitrary"),
        ),
    )(x)

    if not flatten:
        out = out.reshape(B, C, 1, 1)
    return out


if __name__ == "__main__":
    key = jax.random.PRNGKey(0)

    # NHWC input, consistent with the module's forward (it permutes to NCHW).
    B, H, W, C = 2, 16, 16, 4
    x = jax.random.normal(key, (B, H, W, C), dtype=jnp.float32)

    # avg pool (default configuration of the module), flatten=True
    y = jax.block_until_ready(select_adaptive_pool2d(x, pool_type="avg", flatten=True))
    ref = jnp.mean(x, axis=(1, 2))
    assert y.shape == (B, C), y.shape
    assert jnp.allclose(y, ref, atol=1e-5, rtol=1e-5)

    # max pool variant, and flatten=False path
    y_max = jax.block_until_ready(
        select_adaptive_pool2d(x, pool_type="max", flatten=False)
    )
    ref_max = jnp.max(x, axis=(1, 2)).reshape(B, C, 1, 1)
    assert y_max.shape == (B, C, 1, 1), y_max.shape
    assert jnp.allclose(y_max, ref_max, atol=1e-5, rtol=1e-5)

    # Slightly larger bf16 case to exercise the multi-step (tiled) grid and the
    # f32 accumulation path.
    key2 = jax.random.PRNGKey(0)
    B2, H2, W2, C2 = 16, 8, 8, 256
    x2 = jax.random.normal(key2, (B2, H2, W2, C2), dtype=jnp.bfloat16)

    y2 = jax.block_until_ready(select_adaptive_pool2d(x2, pool_type="avg", flatten=True))
    ref2 = jnp.mean(x2.astype(jnp.float32), axis=(1, 2)).astype(jnp.bfloat16)
    assert y2.shape == (B2, C2), y2.shape
    assert jnp.allclose(
        y2.astype(jnp.float32), ref2.astype(jnp.float32), atol=2e-2, rtol=2e-2
    )

    y2_max = jax.block_until_ready(
        select_adaptive_pool2d(x2, pool_type="max", flatten=True)
    )
    ref2_max = jnp.max(x2, axis=(1, 2))
    assert jnp.allclose(
        y2_max.astype(jnp.float32), ref2_max.astype(jnp.float32), atol=0, rtol=0
    )

    print("KERNEL_OK")
</pallas_src>

<mosaic_0001>
module attributes {stable_mosaic.version = 11 : i64} {
  func.func @_avg_pool_kernel(%arg0: i32, %arg1: i32, %arg2: i32, %arg3: memref<2x16x16x4xf32, #tpu.memory_space<vmem>>, %arg4: memref<2x4xf32, #tpu.memory_space<vmem>>, %arg5: memref<2x4xf32, #tpu.memory_space<vmem>>) attributes {dimension_semantics = [#tpu.dimension_semantics<parallel>, #tpu.dimension_semantics<parallel>, #tpu.dimension_semantics<arbitrary>], iteration_bounds = array<i64: 1, 1, 1>, scalar_prefetch = 0 : i64, scratch_operands = 1 : i64, tpu.core_type = #tpu.core_type<tc>, window_params = [{transform_indices = @transform_0, window_bounds = array<i64: 2, 16, 16, 4>}, {transform_indices = @transform_1, window_bounds = array<i64: 2, 4>}]} {
    %c0_i32 = arith.constant 0 : i32
    %0 = arith.cmpi eq, %arg2, %c0_i32 : i32
    %1 = arith.extui %0 : i1 to i32
    %c0_i32_0 = arith.constant 0 : i32
    %2 = arith.cmpi ne, %1, %c0_i32_0 : i32
    scf.if %2 {
      %cst_10 = arith.constant 0.000000e+00 : f32
      %11 = vector.broadcast %cst_10 : f32 to vector<2x4xf32>
      %c0_11 = arith.constant 0 : index
      %c0_12 = arith.constant 0 : index
      %12 = vector.load %arg5[%c0_11, %c0_12] : memref<2x4xf32, #tpu.memory_space<vmem>>, vector<2x4xf32>
      tpu.vector_store %arg5[%c0_11, %c0_12], %11 {strides = array<i32>} : memref<2x4xf32, #tpu.memory_space<vmem>>, vector<2x4xf32>,
    } else {
    }
    %c0 = arith.constant 0 : index
    %c0_1 = arith.constant 0 : index
    %3 = vector.load %arg5[%c0, %c0_1] : memref<2x4xf32, #tpu.memory_space<vmem>>, vector<2x4xf32>
    %c0_2 = arith.constant 0 : index
    %c0_3 = arith.constant 0 : index
    %c0_4 = arith.constant 0 : index
    %c0_5 = arith.constant 0 : index
    %4 = vector.load %arg3[%c0_2, %c0_3, %c0_4, %c0_5] : memref<2x16x16x4xf32, #tpu.memory_space<vmem>>, vector<2x16x16x4xf32>
    %cst = arith.constant dense<0.000000e+00> : vector<2x4xf32>
    %5 = vector.multi_reduction <add>, %4, %cst [1, 2] : vector<2x16x16x4xf32> to vector<2x4xf32>
    %6 = arith.addf %3, %5 : vector<2x4xf32>
    %c0_6 = arith.constant 0 : index
    %c0_7 = arith.constant 0 : index
    %7 = vector.load %arg5[%c0_6, %c0_7] : memref<2x4xf32, #tpu.memory_space<vmem>>, vector<2x4xf32>
    tpu.vector_store %arg5[%c0_6, %c0_7], %6 {strides = array<i32>} : memref<2x4xf32, #tpu.memory_space<vmem>>, vector<2x4xf32>,
    %c0_i32_8 = arith.constant 0 : i32
    %8 = arith.cmpi eq, %arg2, %c0_i32_8 : i32
    %9 = arith.extui %8 : i1 to i32
    %c0_i32_9 = arith.constant 0 : i32
    %10 = arith.cmpi ne, %9, %c0_i32_9 : i32
    scf.if %10 {
      %c0_10 = arith.constant 0 : index
      %c0_11 = arith.constant 0 : index
      %11 = vector.load %arg5[%c0_10, %c0_11] : memref<2x4xf32, #tpu.memory_space<vmem>>, vector<2x4xf32>
      %cst_12 = arith.constant 3.906250e-03 : f32
      %12 = vector.broadcast %cst_12 : f32 to vector<2x4xf32>
      %13 = arith.mulf %11, %12 : vector<2x4xf32>
      %c0_13 = arith.constant 0 : index
      %c0_14 = arith.constant 0 : index
      %14 = vector.load %arg4[%c0_13, %c0_14] : memref<2x4xf32, #tpu.memory_space<vmem>>, vector<2x4xf32>
      tpu.vector_store %arg4[%c0_13, %c0_14], %13 {strides = array<i32>} : memref<2x4xf32, #tpu.memory_space<vmem>>, vector<2x4xf32>,
    } else {
    }
    return
  }
  func.func @transform_0(%arg0: i32, %arg1: i32, %arg2: i32) -> (i32, i32, i32, i32) {
    %c0_i32 = arith.constant 0 : i32
    %c0_i32_0 = arith.constant 0 : i32
    return %arg0, %arg2, %c0_i32, %arg1 : i32, i32, i32, i32
  }
  func.func @transform_1(%arg0: i32, %arg1: i32, %arg2: i32) -> (i32, i32) {
    %c0_i32 = arith.constant 0 : i32
    return %arg0, %arg1 : i32, i32
  }
}

</mosaic_0001>

<llo_original>
// kernel: tpu_custom_call.1
$region0: #{tpu_custom_call.1}
  #allocation0 [shape = 'u32[]', space=smem, size = 0x4, offset = 0x4, fixed_abs, tag = 'smem constant byte address 0x4 - core index']
  #allocation1 [shape = 'u32[144,128]{1,0:T(1,128)}', space=vmem, size = 0x12000, scoped, tag = 'internal scratch']
  #allocation2 [shape = 'f32[2,4]{1,0:T(2,128)}', space=vmem, size = 0x400, scoped, tag = 'scratch operand']
  %s0 = inlined_call_operand.vmem [shape: f32[2,16,16,4], index: 0, kind: input, shape index: {}]
  %s1 = inlined_call_operand.hbm [shape: f32[2,4], index: 1, kind: output, shape index: {}]
  %s2 = sld [smem:[#allocation0]]
  $region22: #{tpu_custom_call.1} parent=0
    _
  %s4 = ssub.s32 1, %s2
  %s5 = scalar_select 0, %s4, %s2
  $region1: #{tpu_custom_call.1} parent=0
    #allocation3 [shape = 'u8[1024]{0}', space=vmem, size = 0x400, scoped, tag = 'output window, operand 0, single buffered']
    #allocation4 [shape = 's32[1]{0}', space=sflag, size = 0x4, scoped, tag = 'scoped memory for tpu_custom_call.1']
    %6 = vsyncpa [#allocation4], 0
    // Predicated region
    $region2: #{tpu_custom_call.1} parent=1 // pred_check
      _
    $region3: #{tpu_custom_call.1} parent=1 // pred_check_branch
      %8 = sbr.rel (0) target = $region5
    $region4: #{tpu_custom_call.1} parent=1 // pred_region
      _
    $region5: #{tpu_custom_call.1} parent=1 // pred_fallthru
      _
    %p9 = scmp.eq.s32.totalorder 0, 0
    // Predicated region
    $region6: #{tpu_custom_call.1} parent=1 // pred_check
      %p10 = pneg %p9
    $region7: #{tpu_custom_call.1} parent=1 // pred_check_branch
      %12 = sbr.rel (%p10) target = $region9
    $region8: #{tpu_custom_call.1} parent=1 // pred_region
      %vm13 = vcmask 25600
      %14 = vst.msk [vmem:[#allocation2] sm:$0x3] %vm13, 0.0
    $region9: #{tpu_custom_call.1} parent=1 // pred_fallthru
      _
    %v15 = vld [vmem:[#allocation2] sm:$0x3]
    %v16 = vld [vmem:[%s0] sm:$0xff]
    %v17 = vld [vmem:[%s0 + $0x8] sm:$0xff]
    %v18 = vld [vmem:[%s0 + $0x10] sm:$0xff]
    %v19 = vld [vmem:[%s0 + $0x18] sm:$0xff]
    %v20 = vld [vmem:[%s0 + $0x20] sm:$0xff]
    %v21 = vld [vmem:[%s0 + $0x28] sm:$0xff]
    %v22 = vld [vmem:[%s0 + $0x30] sm:$0xff]
    %v23 = vld [vmem:[%s0 + $0x38] sm:$0xff]
    %v24 = vld [vmem:[%s0 + $0x40] sm:$0xff]
    %v25 = vld [vmem:[%s0 + $0x48] sm:$0xff]
    %v26 = vld [vmem:[%s0 + $0x50] sm:$0xff]
    %v27 = vld [vmem:[%s0 + $0x58] sm:$0xff]
    %v28 = vld [vmem:[%s0 + $0x60] sm:$0xff]
    %v29 = vld [vmem:[%s0 + $0x68] sm:$0xff]
    %v30 = vld [vmem:[%s0 + $0x70] sm:$0xff]
    %v31 = vld [vmem:[%s0 + $0x78] sm:$0xff]
    %v32 = vld [vmem:[%s0 + $0x80] sm:$0xff]
    %v33 = vld [vmem:[%s0 + $0x88] sm:$0xff]
    %v34 = vld [vmem:[%s0 + $0x90] sm:$0xff]
    %v35 = vld [vmem:[%s0 + $0x98] sm:$0xff]
    %v36 = vld [vmem:[%s0 + $0xa0] sm:$0xff]
    %v37 = vld [vmem:[%s0 + $0xa8] sm:$0xff]
    %v38 = vld [vmem:[%s0 + $0xb0] sm:$0xff]
    %v39 = vld [vmem:[%s0 + $0xb8] sm:$0xff]
    %v40 = vld [vmem:[%s0 + $0xc0] sm:$0xff]
    %v41 = vld [vmem:[%s0 + $0xc8] sm:$0xff]
    %v42 = vld [vmem:[%s0 + $0xd0] sm:$0xff]
    %v43 = vld [vmem:[%s0 + $0xd8] sm:$0xff]
    %v44 = vld [vmem:[%s0 + $0xe0] sm:$0xff]
    %v45 = vld [vmem:[%s0 + $0xe8] sm:$0xff]
    %v46 = vld [vmem:[%s0 + $0xf0] sm:$0xff]
    %v47 = vld [vmem:[%s0 + $0xf8] sm:$0xff]
    %v48 = vld [vmem:[%s0 + $0x100] sm:$0xff]
    %v49 = vld [vmem:[%s0 + $0x108] sm:$0xff]
    %v50 = vld [vmem:[%s0 + $0x110] sm:$0xff]
    %v51 = vld [vmem:[%s0 + $0x118] sm:$0xff]
    %v52 = vld [vmem:[%s0 + $0x120] sm:$0xff]
    %v53 = vld [vmem:[%s0 + $0x128] sm:$0xff]
    %v54 = vld [vmem:[%s0 + $0x130] sm:$0xff]
    %v55 = vld [vmem:[%s0 + $0x138] sm:$0xff]
    %v56 = vld [vmem:[%s0 + $0x140] sm:$0xff]
    %v57 = vld [vmem:[%s0 + $0x148] sm:$0xff]
    %v58 = vld [vmem:[%s0 + $0x150] sm:$0xff]
    %v59 = vld [vmem:[%s0 + $0x158] sm:$0xff]
    %v60 = vld [vmem:[%s0 + $0x160] sm:$0xff]
    %v61 = vld [vmem:[%s0 + $0x168] sm:$0xff]
    %v62 = vld [vmem:[%s0 + $0x170] sm:$0xff]
    %v63 = vld [vmem:[%s0 + $0x178] sm:$0xff]
    %v64 = vld [vmem:[%s0 + $0x180] sm:$0xff]
    %v65 = vld [vmem:[%s0 + $0x188] sm:$0xff]
    %v66 = vld [vmem:[%s0 + $0x190] sm:$0xff]
    %v67 = vld [vmem:[%s0 + $0x198] sm:$0xff]
    %v68 = vld [vmem:[%s0 + $0x1a0] sm:$0xff]
    %v69 = vld [vmem:[%s0 + $0x1a8] sm:$0xff]
    %v70 = vld [vmem:[%s0 + $0x1b0] sm:$0xff]
    %v71 = vld [vmem:[%s0 + $0x1b8] sm:$0xff]
    %v72 = vld [vmem:[%s0 + $0x1c0] sm:$0xff]
    %v73 = vld [vmem:[%s0 + $0x1c8] sm:$0xff]
    %v74 = vld [vmem:[%s0 + $0x1d0] sm:$0xff]
    %v75 = vld [vmem:[%s0 + $0x1d8] sm:$0xff]
    %v76 = vld [vmem:[%s0 + $0x1e0] sm:$0xff]
    %v77 = vld [vmem:[%s0 + $0x1e8] sm:$0xff]
    %v78 = vld [vmem:[%s0 + $0x1f0] sm:$0xff]
    %v79 = vld [vmem:[%s0 + $0x1f8] sm:$0xff]
    %vm80 = vcmask 31744
    %v81 = vsel %vm80, %v16, 0.0
    %v82 = vsel %vm80, %v17, 0.0
    %v83 = vadd.f32 %v81, %v82
    %v84 = vsel %vm80, %v18, 0.0
    %v85 = vadd.f32 %v83, %v84
    %v86 = vsel %vm80, %v19, 0.0
    %v87 = vadd.f32 %v85, %v86
    %v88 = vsel %vm80, %v20, 0.0
    %v89 = vadd.f32 %v87, %v88
    %v90 = vsel %vm80, %v21, 0.0
    %v91 = vadd.f32 %v89, %v90
    %v92 = vsel %vm80, %v22, 0.0
    %v93 = vadd.f32 %v91, %v92
    %v94 = vsel %vm80, %v23, 0.0
    %v95 = vadd.f32 %v93, %v94
    %v96 = vsel %vm80, %v24, 0.0
    %v97 = vadd.f32 %v95, %v96
    %v98 = vsel %vm80, %v25, 0.0
    %v99 = vadd.f32 %v97, %v98
    %v100 = vsel %vm80, %v26, 0.0
    %v101 = vadd.f32 %v99, %v100
    %v102 = vsel %vm80, %v27, 0.0
    %v103 = vadd.f32 %v101, %v102
    %v104 = vsel %vm80, %v28, 0.0
    %v105 = vadd.f32 %v103, %v104
    %v106 = vsel %vm80, %v29, 0.0
    %v107 = vadd.f32 %v105, %v106
    %v108 = vsel %vm80, %v30, 0.0
    %v109 = vadd.f32 %v107, %v108
    %v110 = vsel %vm80, %v31, 0.0
    %v111 = vadd.f32 %v109, %v110
    %v112 = vsel %vm80, %v32, 0.0
    %v113 = vadd.f32 %v111, %v112
    %v114 = vsel %vm80, %v33, 0.0
    %v115 = vadd.f32 %v113, %v114
    %v116 = vsel %vm80, %v34, 0.0
    %v117 = vadd.f32 %v115, %v116
    %v118 = vsel %vm80, %v35, 0.0
    %v119 = vadd.f32 %v117, %v118
    %v120 = vsel %vm80, %v36, 0.0
    %v121 = vadd.f32 %v119, %v120
    %v122 = vsel %vm80, %v37, 0.0
    %v123 = vadd.f32 %v121, %v122
    %v124 = vsel %vm80, %v38, 0.0
    %v125 = vadd.f32 %v123, %v124
    %v126 = vsel %vm80, %v39, 0.0
    %v127 = vadd.f32 %v125, %v126
    %v128 = vsel %vm80, %v40, 0.0
    %v129 = vadd.f32 %v127, %v128
    %v130 = vsel %vm80, %v41, 0.0
    %v131 = vadd.f32 %v129, %v130
    %v132 = vsel %vm80, %v42, 0.0
    %v133 = vadd.f32 %v131, %v132
    %v134 = vsel %vm80, %v43, 0.0
    %v135 = vadd.f32 %v133, %v134
    %v136 = vsel %vm80, %v44, 0.0
    %v137 = vadd.f32 %v135, %v136
    %v138 = vsel %vm80, %v45, 0.0
    %v139 = vadd.f32 %v137, %v138
    %v140 = vsel %vm80, %v46, 0.0
    %v141 = vadd.f32 %v139, %v140
    %v142 = vsel %vm80, %v47, 0.0
    %v143 = vadd.f32 %v141, %v142
    %v144 = vrot.slane %v143, 4
    %v145 = vadd.f32 %v143, %v144
    %v146 = vrot.slane %v145, 2
    %v147 = vadd.f32 %v145, %v146
    %v148 = vrot.slane %v147, 1
    %v149 = vadd.f32 %v147, %v148
    %v150 = vsel %vm80, %v48, 0.0
    %v151 = vsel %vm80, %v49, 0.0
    %v152 = vadd.f32 %v150, %v151
    %v153 = vsel %vm80, %v50, 0.0
    %v154 = vadd.f32 %v152, %v153
    %v155 = vsel %vm80, %v51, 0.0
    %v156 = vadd.f32 %v154, %v155
    %v157 = vsel %vm80, %v52, 0.0
    %v158 = vadd.f32 %v156, %v157
    %v159 = vsel %vm80, %v53, 0.0
    %v160 = vadd.f32 %v158, %v159
    %v161 = vsel %vm80, %v54, 0.0
    %v162 = vadd.f32 %v160, %v161
    %v163 = vsel %vm80, %v55, 0.0
    %v164 = vadd.f32 %v162, %v163
    %v165 = vsel %vm80, %v56, 0.0
    %v166 = vadd.f32 %v164, %v165
    %v167 = vsel %vm80, %v57, 0.0
    %v168 = vadd.f32 %v166, %v167
    %v169 = vsel %vm80, %v58, 0.0
    %v170 = vadd.f32 %v168, %v169
    %v171 = vsel %vm80, %v59, 0.0
    %v172 = vadd.f32 %v170, %v171
    %v173 = vsel %vm80, %v60, 0.0
    %v174 = vadd.f32 %v172, %v173
    %v175 = vsel %vm80, %v61, 0.0
    %v176 = vadd.f32 %v174, %v175
    %v177 = vsel %vm80, %v62, 0.0
    %v178 = vadd.f32 %v176, %v177
    %v179 = vsel %vm80, %v63, 0.0
    %v180 = vadd.f32 %v178, %v179
    %v181 = vsel %vm80, %v64, 0.0
    %v182 = vadd.f32 %v180, %v181
    %v183 = vsel %vm80, %v65, 0.0
    %v184 = vadd.f32 %v182, %v183
    %v185 = vsel %vm80, %v66, 0.0
    %v186 = vadd.f32 %v184, %v185
    %v187 = vsel %vm80, %v67, 0.0
    %v188 = vadd.f32 %v186, %v187
    %v189 = vsel %vm80, %v68, 0.0
    %v190 = vadd.f32 %v188, %v189
    %v191 = vsel %vm80, %v69, 0.0
    %v192 = vadd.f32 %v190, %v191
    %v193 = vsel %vm80, %v70, 0.0
    %v194 = vadd.f32 %v192, %v193
    %v195 = vsel %vm80, %v71, 0.0
    %v196 = vadd.f32 %v194, %v195
    %v197 = vsel %vm80, %v72, 0.0
    %v198 = vadd.f32 %v196, %v197
    %v199 = vsel %vm80, %v73, 0.0
    %v200 = vadd.f32 %v198, %v199
    %v201 = vsel %vm80, %v74, 0.0
    %v202 = vadd.f32 %v200, %v201
    %v203 = vsel %vm80, %v75, 0.0
    %v204 = vadd.f32 %v202, %v203
    %v205 = vsel %vm80, %v76, 0.0
    %v206 = vadd.f32 %v204, %v205
    %v207 = vsel %vm80, %v77, 0.0
    %v208 = vadd.f32 %v206, %v207
    %v209 = vsel %vm80, %v78, 0.0
    %v210 = vadd.f32 %v208, %v209
    %v211 = vsel %vm80, %v79, 0.0
    %v212 = vadd.f32 %v210, %v211
    %v213 = vrot.slane %v212, 4
    %v214 = vadd.f32 %v212, %v213
    %v215 = vrot.slane %v214, 2
    %v216 = vadd.f32 %v214, %v215
    %v217 = vrot.slane %v216, 1
    %v218 = vadd.f32 %v216, %v217
    %vm221 = vcmask 1041409
    %v222 = vsel %vm221, %v218, %v149
    %v224 = vadd.f32 %v15, %v222
    %vm225 = vcmask 25600
    %226 = vst.msk [vmem:[#allocation2] sm:$0x3] %vm225, %v224
    // Predicated region
    $region10: #{tpu_custom_call.1} parent=1 // pred_check
      %p227 = pneg %p9
    $region11: #{tpu_custom_call.1} parent=1 // pred_check_branch
      %229 = sbr.rel (%p227) target = $region13
    $region12: #{tpu_custom_call.1} parent=1 // pred_region
      %v230 = vld [vmem:[#allocation2] sm:$0x3]
      %v231 = vmul.f32 %v230, 0.00390625
      %232 = vst.msk [vmem:[#allocation3] sm:$0x3] %vm225, %v231
    $region13: #{tpu_custom_call.1} parent=1 // pred_fallthru
      _
    // Predicated region
    $region14: #{tpu_custom_call.1} parent=1 // pred_check
      _
    $region15: #{tpu_custom_call.1} parent=1 // pred_check_branch
      %234 = sbr.rel (0) target = $region17
    $region16: #{tpu_custom_call.1} parent=1 // pred_region
      %s236 = ssub.s32 32, 32
      %237 = vsyncadd [#allocation4], %s236
      %s239 = sshll.u32 [#allocation3], 4
      %s240 = int_to_ptr.vmem [resolvable:$true] %s239
      %242 = dma.vmem_to_hbm [thread:$0]  %s240, 32, %s1, [#allocation4]
    $region17: #{tpu_custom_call.1} parent=1 // pred_fallthru
      _
    // Predicated region
    $region18: #{tpu_custom_call.1} parent=1 // pred_check
      _
    $region19: #{tpu_custom_call.1} parent=1 // pred_check_branch
      %244 = sbr.rel (0) target = $region21
    $region20: #{tpu_custom_call.1} parent=1 // pred_region
      %245 = dma.done [#allocation4], 32
    $region21: #{tpu_custom_call.1} parent=1 // pred_fallthru
      _
    %246 = vsyncpa [#allocation4], 1

</llo_original>
